<compile_context>
chip_gen: v7x
topology: tpu7x:2x2x1
jax: 0.10.0
libtpu: 0.0.40
codegen_flags: <defaults>
</compile_context>

<pallas_src>
import functools

import jax
import jax.numpy as jnp
import numpy as np
from jax.experimental import pallas as pl
from jax.experimental.pallas import tpu as pltpu

_LANE = 128
_SUBLANE = 8
_EPS = 1e-8
_POSI_DIM = 6      # absoluteEncode feature width
_POSI_PAD = 8      # padded once to a sublane multiple


def _round_up(x, m):
    return (x + m - 1) // m * m


def _vmem_capacity_bytes():
    try:
        return int(pltpu.get_tpu_info().vmem_capacity_bytes)
    except Exception:
        return 64 * 1024 * 1024  # conservative (v7x-sized) default if the query is unavailable


def _pick_tile_rows(M, Kx, N, x_itemsize):
    """Largest row tile (<=512, multiple of 8) whose resident VMEM estimate fits the budget.

    The estimate includes the double-buffered resident params, the double-buffered streamed
    tiles AND the f32 epilogue intermediates.  The tile is also capped so the row grid has at
    least two steps, letting the "parallel" axis span both v7x TensorCores.
    """
    budget = int(0.8 * _vmem_capacity_bytes())
    # Resident params (default double-buffered; constant index_map => DMA'd only once).
    param_bytes = 2 * (Kx * N * 2            # fc weight, bf16
                       + _POSI_PAD * N * 4   # posi weight, f32
                       + 2 * N * 4)          # two biases, f32
    m_cap = _round_up(max(int(M), 1), _SUBLANE)
    two_step_cap = _round_up(pl.cdiv(max(int(M), 1), 2), _SUBLANE)

    def estimate(tm):
        stream = 2 * tm * (Kx * x_itemsize + _POSI_PAD * 4 + 2 * N * 4)  # in/out tiles, 2 bufs
        interm = 4 * tm * N * 4                                          # f32 feat/sq/z temps
        return param_bytes + stream + interm

    tm = min(_SUBLANE, m_cap)
    for cand in (512, 256, 128, 64, 32, 16, 8):
        cand_eff = min(cand, m_cap, two_step_cap)
        if estimate(cand_eff) <= budget:
            tm = cand_eff
            break
    # (For weights that alone overflow VMEM a K-axis reduction grid would be the proper fix.)
    return tm, estimate(tm)


# ---------------------------------------------------------------------------
# Fused kernel: one MXU matmul per row tile + l2norm epilogue, plus the tiny
# position projection + sigmoid as a second output of the same call.
# ---------------------------------------------------------------------------

def _fc_l2norm_posi_kernel(x_ref, p_ref, wx_ref, bx_ref, wp_ref, bp_ref,
                           img_ref, posi_ref):
    # fc + l2norm: bf16 MXU operands, f32 accumulator, f32 epilogue, exact reciprocal.
    feat = jnp.dot(x_ref[...].astype(jnp.bfloat16), wx_ref[...],
                   preferred_element_type=jnp.float32)
    feat = feat + bx_ref[...]
    denom = jnp.sqrt(jnp.sum(feat * feat, axis=-1, keepdims=True)) + _EPS
    img_ref[...] = (feat * pl.reciprocal(denom, approx=False)).astype(img_ref.dtype)

    # Position projection (K=8 contraction is negligible next to the main matmul) + sigmoid
    # via exp (EUP) + reciprocal instead of an explicit VPU divide.
    z = jnp.dot(p_ref[...], wp_ref[...], preferred_element_type=jnp.float32) + bp_ref[...]
    posi_ref[...] = pl.reciprocal(1.0 + jnp.exp(-z), approx=False).astype(posi_ref.dtype)


def _fused_fc_posi(x2d, posi2d, fc_w, fc_b, posi_w, posi_b, embed_size):
    """Single pallas_call over shared row tiles.

    x2d: (M, img_dim); posi2d: (M, 6).  fc_w: (k_pad, n_pad) bf16; posi_w: (8, n_pad) f32;
    fc_b / posi_b: (1, n_pad) f32.  Returns ((M, embed_size), (M, embed_size)).
    """
    M, Kx = x2d.shape
    k_pad, n_pad = fc_w.shape

    if k_pad != Kx:
        x2d = jnp.pad(x2d, ((0, 0), (0, k_pad - Kx)))
    posi2d = jnp.pad(posi2d, ((0, 0), (0, _POSI_PAD - posi2d.shape[1])))

    tm, vmem_est = _pick_tile_rows(M, k_pad, n_pad, jnp.dtype(x2d.dtype).itemsize)
    cap = _vmem_capacity_bytes()
    vmem_limit = int(min(0.9 * cap, max(32 << 20, 1.5 * vmem_est + (4 << 20))))

    img2d, posi_out = pl.pallas_call(
        _fc_l2norm_posi_kernel,
        out_shape=(jax.ShapeDtypeStruct((M, n_pad), x2d.dtype),
                   jax.ShapeDtypeStruct((M, n_pad), posi2d.dtype)),
        grid_spec=pltpu.PrefetchScalarGridSpec(
            num_scalar_prefetch=0,
            grid=(pl.cdiv(M, tm),),                              # partial last tile is masked
            in_specs=[
                pl.BlockSpec((tm, k_pad), lambda i: (i, 0)),      # streamed image features
                pl.BlockSpec((tm, _POSI_PAD), lambda i: (i, 0)),  # streamed position features
                pl.BlockSpec((k_pad, n_pad), lambda i: (0, 0)),   # resident fc weight (bf16)
                pl.BlockSpec((1, n_pad), lambda i: (0, 0)),       # resident fc bias (f32)
                pl.BlockSpec((_POSI_PAD, n_pad), lambda i: (0, 0)),  # resident posi weight
                pl.BlockSpec((1, n_pad), lambda i: (0, 0)),       # resident posi bias
            ],
            out_specs=[
                pl.BlockSpec((tm, n_pad), lambda i: (i, 0)),      # lane-dense stores
                pl.BlockSpec((tm, n_pad), lambda i: (i, 0)),
            ],
        ),
        compiler_params=pltpu.CompilerParams(
            dimension_semantics=("parallel",),    # row grid can shard across v7x's 2 TCs
            vmem_limit_bytes=vmem_limit,
        ),
    )(x2d, posi2d, fc_w, fc_b, posi_w, posi_b)

    if n_pad != embed_size:
        img2d = img2d[:, :embed_size]
        posi_out = posi_out[:, :embed_size]
    return img2d, posi_out


# ---------------------------------------------------------------------------
# Module-level wrappers.
# ---------------------------------------------------------------------------

def absolute_encode(boxes, imgs_wh):
    """absoluteEncode: tiny elementwise prelude, computed in the JAX wrapper (under the jit)."""
    x = boxes[:, :, 0]
    y = boxes[:, :, 1]
    w = boxes[:, :, 2] - boxes[:, :, 0]
    h = boxes[:, :, 3] - boxes[:, :, 1]
    expand_wh = jnp.concatenate([imgs_wh, imgs_wh], axis=1)[:, None, :]            # (B,1,4)
    ratio_wh = (w / h)[..., None]                                                  # (B,R,1)
    ratio_area = (w * h / (imgs_wh[:, 0] * imgs_wh[:, 1])[:, None])[..., None]     # (B,R,1)
    boxes4 = jnp.stack([x, y, w, h], axis=2) / expand_wh                           # (B,R,4)
    return jnp.concatenate([boxes4, ratio_wh, ratio_area], axis=-1)                # (B,R,6)


@functools.partial(jax.jit, static_argnums=(7,))
def _encoder_fwd(images, boxes, imgs_wh, fc_w, fc_b, posi_w, posi_b, embed_size):
    lead = images.shape[:-1]
    M = int(np.prod(lead)) if lead else 1
    posi = absolute_encode(boxes, imgs_wh)                         # (B, R, 6)
    img2d, posi2d = _fused_fc_posi(images.reshape(M, images.shape[-1]),
                                   posi.reshape(M, _POSI_DIM),
                                   fc_w, fc_b, posi_w, posi_b, embed_size)
    return img2d.reshape(*lead, embed_size), posi2d.reshape(*lead, embed_size)


def encoder_image_precomp_self_attn(images, boxes, imgs_wh, params):
    """Pallas-backed pieces of EncoderImagePrecompSelfAttn.forward.

    Returns (fc_img_emd, posi_emb): the l2-normalized fc embedding and the position encoding
    that feed the (unspecified) AGSA block.
    """
    return _encoder_fwd(images, boxes, imgs_wh,
                        params["fc_w"], params["fc_b"],
                        params["posi_w"], params["posi_b"],
                        params["embed_size"])


def init_raw_params(key, img_dim, embed_size):
    """Matches the PyTorch inits: Xavier-uniform fc (zero bias); default nn.Linear for proj."""
    k_fc, k_pw, k_pb = jax.random.split(key, 3)
    r = np.sqrt(6.0) / np.sqrt(img_dim + embed_size)
    fc_w = jax.random.uniform(k_fc, (embed_size, img_dim), jnp.float32, -r, r)   # (out, in)
    fc_b = jnp.zeros((embed_size,), jnp.float32)
    bound = 1.0 / np.sqrt(_POSI_DIM)
    posi_w = jax.random.uniform(k_pw, (embed_size, _POSI_DIM), jnp.float32, -bound, bound)
    posi_b = jax.random.uniform(k_pb, (embed_size,), jnp.float32, -bound, bound)
    return dict(fc_w=fc_w, fc_b=fc_b, posi_w=posi_w, posi_b=posi_b)


def prepare_params(raw):
    """One-time, load-time prep: transpose to (in, out), pad K->sublane / N->128 lanes, and
    cast the fc weight to bf16 (halves HBM/VMEM footprint, bf16 MXU operands)."""
    embed_size, img_dim = raw["fc_w"].shape
    k_pad = _round_up(img_dim, _SUBLANE)
    n_pad = _round_up(embed_size, _LANE)

    def pad_w(w_pt, k_to):
        w = jnp.asarray(w_pt).T
        return jnp.pad(w, ((0, k_to - w.shape[0]), (0, n_pad - embed_size)))

    def pad_b(b):
        b = jnp.asarray(b).reshape(1, -1).astype(jnp.float32)
        return jnp.pad(b, ((0, 0), (0, n_pad - embed_size)))

    return dict(
        fc_w=pad_w(raw["fc_w"], k_pad).astype(jnp.bfloat16),
        fc_b=pad_b(raw["fc_b"]),
        posi_w=pad_w(raw["posi_w"], _POSI_PAD).astype(jnp.float32),
        posi_b=pad_b(raw["posi_b"]),
        embed_size=embed_size,
    )


def init_params(key, img_dim, embed_size):
    return prepare_params(init_raw_params(key, img_dim, embed_size))


if __name__ == "__main__":
    key = jax.random.PRNGKey(0)
    k_img, k_box, k_wh, k_par = jax.random.split(key, 4)

    # Small but lane-friendly shapes (real model uses img_dim=2048, embed=1024).
    batch, n_regions, img_dim, embed_size = 2, 8, 128, 256

    images = jax.random.normal(k_img, (batch, n_regions, img_dim), jnp.float32)
    imgs_wh = jnp.full((batch, 2), 32.0, jnp.float32) + jax.random.uniform(k_wh, (batch, 2)) * 4.0
    xy1 = jax.random.uniform(k_box, (batch, n_regions, 2), jnp.float32, 0.0, 10.0)
    wh = jax.random.uniform(jax.random.fold_in(k_box, 1), (batch, n_regions, 2), jnp.float32, 1.0, 10.0)
    boxes = jnp.concatenate([xy1, xy1 + wh], axis=-1)     # [x1, y1, x2, y2]

    raw = init_raw_params(k_par, img_dim, embed_size)
    params = prepare_params(raw)

    fc_emb, posi_emb = encoder_image_precomp_self_attn(images, boxes, imgs_wh, params)
    fc_emb, posi_emb = jax.block_until_ready((fc_emb, posi_emb))

    # ---- references ----
    # (a) bf16-operand reference (what the kernel computes), tight tolerance.
    ref_fc = jnp.dot(images.astype(jnp.bfloat16).reshape(-1, img_dim),
                     params["fc_w"][:img_dim, :embed_size],
                     preferred_element_type=jnp.float32) + params["fc_b"][:, :embed_size]
    ref_fc = ref_fc / (jnp.sqrt(jnp.sum(ref_fc * ref_fc, axis=-1, keepdims=True)) + _EPS)
    np.testing.assert_allclose(np.asarray(fc_emb).reshape(-1, embed_size),
                               np.asarray(ref_fc), rtol=2e-3, atol=2e-3)

    # (b) exact-f32 semantics of the original module, loose tolerance (bf16 MXU operands).
    ref_f32 = np.asarray(images).reshape(-1, img_dim) @ np.asarray(raw["fc_w"]).T + np.asarray(raw["fc_b"])
    ref_f32 = ref_f32 / (np.sqrt(np.sum(ref_f32 * ref_f32, axis=-1, keepdims=True)) + _EPS)
    np.testing.assert_allclose(np.asarray(fc_emb).reshape(-1, embed_size), ref_f32,
                               rtol=3e-2, atol=3e-2)

    # (c) position branch (kept f32 end-to-end).
    posi_np = np.asarray(absolute_encode(boxes, imgs_wh)).reshape(-1, _POSI_DIM)
    ref_posi = 1.0 / (1.0 + np.exp(-(posi_np @ np.asarray(raw["posi_w"]).T + np.asarray(raw["posi_b"]))))
    np.testing.assert_allclose(np.asarray(posi_emb).reshape(-1, embed_size), ref_posi,
                               rtol=2e-3, atol=2e-3)

    # Ragged shapes: M = B*R not a multiple of 8 and embed not a multiple of 128 ->
    # exercises the cdiv partial last row tile and the lane padding + output slice.
    b2, r2, k2, n2 = 3, 7, 80, 96
    imgs2 = jax.random.normal(jax.random.fold_in(k_img, 7), (b2, r2, k2), jnp.float32)
    wh2 = jnp.full((b2, 2), 24.0, jnp.float32) + jax.random.uniform(jax.random.fold_in(k_wh, 7), (b2, 2)) * 4.0
    xy1b = jax.random.uniform(jax.random.fold_in(k_box, 7), (b2, r2, 2), jnp.float32, 0.0, 8.0)
    whb = jax.random.uniform(jax.random.fold_in(k_box, 8), (b2, r2, 2), jnp.float32, 1.0, 8.0)
    boxes2 = jnp.concatenate([xy1b, xy1b + whb], axis=-1)
    raw2 = init_raw_params(jax.random.fold_in(k_par, 7), k2, n2)
    p2 = prepare_params(raw2)

    fc2, posi2 = jax.block_until_ready(encoder_image_precomp_self_attn(imgs2, boxes2, wh2, p2))

    ref2 = jnp.dot(imgs2.astype(jnp.bfloat16).reshape(-1, k2), p2["fc_w"][:k2, :n2],
                   preferred_element_type=jnp.float32) + p2["fc_b"][:, :n2]
    ref2 = ref2 / (jnp.sqrt(jnp.sum(ref2 * ref2, axis=-1, keepdims=True)) + _EPS)
    np.testing.assert_allclose(np.asarray(fc2).reshape(-1, n2), np.asarray(ref2),
                               rtol=2e-3, atol=2e-3)

    posi2_np = np.asarray(absolute_encode(boxes2, wh2)).reshape(-1, _POSI_DIM)
    refp2 = 1.0 / (1.0 + np.exp(-(posi2_np @ np.asarray(raw2["posi_w"]).T + np.asarray(raw2["posi_b"]))))
    np.testing.assert_allclose(np.asarray(posi2).reshape(-1, n2), refp2, rtol=2e-3, atol=2e-3)

    print("KERNEL_OK")
</pallas_src>

<mosaic_0001>
module attributes {stable_mosaic.version = 11 : i64} {
  func.func @_fc_l2norm_posi_kernel(%arg0: i32, %arg1: memref<8x128xf32, #tpu.memory_space<vmem>>, %arg2: memref<8x8xf32, #tpu.memory_space<vmem>>, %arg3: memref<128x256xbf16, #tpu.memory_space<vmem>>, %arg4: memref<1x256xf32, #tpu.memory_space<vmem>>, %arg5: memref<8x256xf32, #tpu.memory_space<vmem>>, %arg6: memref<1x256xf32, #tpu.memory_space<vmem>>, %arg7: memref<8x256xf32, #tpu.memory_space<vmem>>, %arg8: memref<8x256xf32, #tpu.memory_space<vmem>>) attributes {dimension_semantics = [#tpu.dimension_semantics<parallel>], iteration_bounds = array<i64: 2>, scalar_prefetch = 0 : i64, scratch_operands = 0 : i64, tpu.core_type = #tpu.core_type<tc>, window_params = [{transform_indices = @transform_0, window_bounds = array<i64: 8, 128>}, {transform_indices = @transform_1, window_bounds = array<i64: 8, 8>}, {pipeline_mode = #tpu.pipeline_mode<synchronous>, transform_indices = @transform_2, window_bounds = array<i64: 128, 256>}, {pipeline_mode = #tpu.pipeline_mode<synchronous>, transform_indices = @transform_3, window_bounds = array<i64: 1, 256>}, {pipeline_mode = #tpu.pipeline_mode<synchronous>, transform_indices = @transform_4, window_bounds = array<i64: 8, 256>}, {pipeline_mode = #tpu.pipeline_mode<synchronous>, transform_indices = @transform_5, window_bounds = array<i64: 1, 256>}, {transform_indices = @transform_6, window_bounds = array<i64: 8, 256>}, {transform_indices = @transform_7, window_bounds = array<i64: 8, 256>}]} {
    %c0 = arith.constant 0 : index
    %c0_0 = arith.constant 0 : index
    %0 = vector.load %arg1[%c0, %c0_0] : memref<8x128xf32, #tpu.memory_space<vmem>>, vector<8x128xf32>
    %1 = arith.truncf %0 : vector<8x128xf32> to vector<8x128xbf16>
    %c0_1 = arith.constant 0 : index
    %c0_2 = arith.constant 0 : index
    %2 = vector.load %arg3[%c0_1, %c0_2] : memref<128x256xbf16, #tpu.memory_space<vmem>>, vector<128x256xbf16>
    %cst = arith.constant dense<0.000000e+00> : vector<8x256xf32>
    %3 = tpu.matmul %1, %2, %cst {dimension_numbers = #tpu.dot_dimension_numbers<[1], [0], [0], [1], [0, 0, 1, 1], [], []>} : vector<8x128xbf16>, vector<128x256xbf16>, vector<8x256xf32> -> vector<8x256xf32>
    %c0_3 = arith.constant 0 : index
    %c0_4 = arith.constant 0 : index
    %4 = vector.load %arg4[%c0_3, %c0_4] : memref<1x256xf32, #tpu.memory_space<vmem>>, vector<1x256xf32>
    %5 = vector.broadcast %4 : vector<1x256xf32> to vector<8x256xf32>
    %6 = arith.addf %3, %5 : vector<8x256xf32>
    %7 = arith.mulf %6, %6 : vector<8x256xf32>
    %cst_5 = arith.constant dense<0.000000e+00> : vector<8xf32>
    %8 = vector.multi_reduction <add>, %7, %cst_5 [1] : vector<8x256xf32> to vector<8xf32>
    %9 = vector.shape_cast %8 : vector<8xf32> to vector<8x1xf32>
    %10 = math.sqrt %9 : vector<8x1xf32>
    %cst_6 = arith.constant 9.99999993E-9 : f32
    %11 = vector.broadcast %cst_6 : f32 to vector<8x1xf32>
    %12 = arith.addf %10, %11 : vector<8x1xf32>
    %13 = tpu.reciprocal %12 : vector<8x1xf32> -> vector<8x1xf32>
    %14 = vector.broadcast %13 : vector<8x1xf32> to vector<8x256xf32>
    %15 = arith.mulf %6, %14 : vector<8x256xf32>
    %c0_7 = arith.constant 0 : index
    %c0_8 = arith.constant 0 : index
    %16 = vector.load %arg7[%c0_7, %c0_8] : memref<8x256xf32, #tpu.memory_space<vmem>>, vector<8x256xf32>
    tpu.vector_store %arg7[%c0_7, %c0_8], %15 {strides = array<i32>} : memref<8x256xf32, #tpu.memory_space<vmem>>, vector<8x256xf32>,
    %c0_9 = arith.constant 0 : index
    %c0_10 = arith.constant 0 : index
    %17 = vector.load %arg2[%c0_9, %c0_10] : memref<8x8xf32, #tpu.memory_space<vmem>>, vector<8x8xf32>
    %c0_11 = arith.constant 0 : index
    %c0_12 = arith.constant 0 : index
    %18 = vector.load %arg5[%c0_11, %c0_12] : memref<8x256xf32, #tpu.memory_space<vmem>>, vector<8x256xf32>
    %cst_13 = arith.constant dense<0.000000e+00> : vector<8x256xf32>
    %19 = tpu.matmul %17, %18, %cst_13 {dimension_numbers = #tpu.dot_dimension_numbers<[1], [0], [0], [1], [0, 0, 1, 1], [], []>} : vector<8x8xf32>, vector<8x256xf32>, vector<8x256xf32> -> vector<8x256xf32>
    %c0_14 = arith.constant 0 : index
    %c0_15 = arith.constant 0 : index
    %20 = vector.load %arg6[%c0_14, %c0_15] : memref<1x256xf32, #tpu.memory_space<vmem>>, vector<1x256xf32>
    %21 = vector.broadcast %20 : vector<1x256xf32> to vector<8x256xf32>
    %22 = arith.addf %19, %21 : vector<8x256xf32>
    %cst_16 = arith.constant 0.000000e+00 : f32
    %23 = vector.broadcast %cst_16 : f32 to vector<8x256xf32>
    %24 = arith.subf %23, %22 : vector<8x256xf32>
    %25 = math.exp %24 : vector<8x256xf32>
    %cst_17 = arith.constant 1.000000e+00 : f32
    %26 = vector.broadcast %cst_17 : f32 to vector<8x256xf32>
    %27 = arith.addf %26, %25 : vector<8x256xf32>
    %28 = tpu.reciprocal %27 : vector<8x256xf32> -> vector<8x256xf32>
    %c0_18 = arith.constant 0 : index
    %c0_19 = arith.constant 0 : index
    %29 = vector.load %arg8[%c0_18, %c0_19] : memref<8x256xf32, #tpu.memory_space<vmem>>, vector<8x256xf32>
    tpu.vector_store %arg8[%c0_18, %c0_19], %28 {strides = array<i32>} : memref<8x256xf32, #tpu.memory_space<vmem>>, vector<8x256xf32>,
    return
  }
  func.func @transform_0(%arg0: i32) -> (i32, i32) {
    %c0_i32 = arith.constant 0 : i32
    %c0_i32_0 = arith.constant 0 : i32
    return %arg0, %c0_i32 : i32, i32
  }
  func.func @transform_1(%arg0: i32) -> (i32, i32) {
    %c0_i32 = arith.constant 0 : i32
    %c0_i32_0 = arith.constant 0 : i32
    return %arg0, %c0_i32 : i32, i32
  }
  func.func @transform_2(%arg0: i32) -> (i32, i32) {
    %c0_i32 = arith.constant 0 : i32
    %c0_i32_0 = arith.constant 0 : i32
    %c0_i32_1 = arith.constant 0 : i32
    return %c0_i32, %c0_i32_0 : i32, i32
  }
  func.func @transform_3(%arg0: i32) -> (i32, i32) {
    %c0_i32 = arith.constant 0 : i32
    %c0_i32_0 = arith.constant 0 : i32
    %c0_i32_1 = arith.constant 0 : i32
    return %c0_i32, %c0_i32_0 : i32, i32
  }
  func.func @transform_4(%arg0: i32) -> (i32, i32) {
    %c0_i32 = arith.constant 0 : i32
    %c0_i32_0 = arith.constant 0 : i32
    %c0_i32_1 = arith.constant 0 : i32
    return %c0_i32, %c0_i32_0 : i32, i32
  }
  func.func @transform_5(%arg0: i32) -> (i32, i32) {
    %c0_i32 = arith.constant 0 : i32
    %c0_i32_0 = arith.constant 0 : i32
    %c0_i32_1 = arith.constant 0 : i32
    return %c0_i32, %c0_i32_0 : i32, i32
  }
  func.func @transform_6(%arg0: i32) -> (i32, i32) {
    %c0_i32 = arith.constant 0 : i32
    %c0_i32_0 = arith.constant 0 : i32
    return %arg0, %c0_i32 : i32, i32
  }
  func.func @transform_7(%arg0: i32) -> (i32, i32) {
    %c0_i32 = arith.constant 0 : i32
    %c0_i32_0 = arith.constant 0 : i32
    return %arg0, %c0_i32 : i32, i32
  }
}

</mosaic_0001>

<llo_original>
// kernel: _encoder_fwd.1
$region0: #{_encoder_fwd.1}
  #allocation0 [shape = 'u32[]', space=smem, size = 0x4, offset = 0x4, fixed_abs, tag = 'smem constant byte address 0x4 - core index']
  #allocation1 [shape = 'u32[144,128]{1,0:T(1,128)}', space=vmem, size = 0x12000, scoped, tag = 'internal scratch']
  %s0 = inlined_call_operand.vmem [shape: f32[16,128], index: 0, kind: input, shape index: {}]
  %s1 = inlined_call_operand.vmem [shape: f32[16,8], index: 1, kind: input, shape index: {}]
  %s2 = inlined_call_operand.vmem [shape: bf16[128,256], index: 2, kind: input, shape index: {}]
  %s3 = inlined_call_operand.vmem [shape: f32[1,256], index: 3, kind: input, shape index: {}]
  %s4 = inlined_call_operand.vmem [shape: f32[8,256], index: 4, kind: input, shape index: {}]
  %s5 = inlined_call_operand.vmem [shape: f32[1,256], index: 5, kind: input, shape index: {}]
  %s6 = inlined_call_operand.hbm [shape: f32[16,256], index: 6, kind: output, shape index: {0}]
  %s7 = inlined_call_operand.hbm [shape: f32[16,256], index: 7, kind: output, shape index: {1}]
  %8 = xla_tuple %s6, %s7
  %s9 = sld [smem:[#allocation0]]
  $region65: #{_encoder_fwd.1} parent=0
    _
  %s11 = ssub.s32 1, %s9
  %s12 = scalar_select 0, %s11, %s9
  $region1: #{_encoder_fwd.1} parent=0
    #allocation2 [shape = 'u8[16384]{0}', space=vmem, size = 0x4000, scoped, tag = 'output window, operand 0']
    #allocation3 [shape = 's32[2]{0}', space=sflag, size = 0x8, scoped, tag = 'scoped memory for _encoder_fwd.1']
    #allocation4 [shape = 'u8[16384]{0}', space=vmem, size = 0x4000, scoped, tag = 'output window, operand 1']
    #allocation5 [shape = 's32[2]{0}', space=sflag, size = 0x8, scoped, tag = 'scoped memory for _encoder_fwd.1']
    %13 = vsyncpa [#allocation3], 0
    %s14 = scalar_lea.sflag [#allocation3], 1
    %15 = vsyncpa %s14, 0
    %16 = vsyncpa [#allocation5], 0
    %s17 = scalar_lea.sflag [#allocation5], 1
    %18 = vsyncpa %s17, 0
    loop: start=0, step=1, limit=4
    $region2: #{_encoder_fwd.1} parent=1 // loop_pre_header
      _
    $region3: #{_encoder_fwd.1} parent=1 // loop_header
      %s20 = sphi 0, %s24
      %p21 = scmp.ge.s32.totalorder %s20, 4
      %s30 = sphi 0, %s32
      %s33 = sphi 0, %s30
      %s34 = sphi 0, %s33
      %s50 = sphi 0, %s34
      %s56 = sphi 0, %s58
      %s59 = sphi 0, %s56
      %s60 = sphi 0, %s59
      %s76 = sphi 0, %s60
      %s80 = sphi 0, %s80
      %s82 = sphi 0, %s80
      %s83 = sphi 0, %s82
      %s97 = sphi 0, %s83
      %s101 = sphi 0, %s101
      %s103 = sphi 0, %s101
      %s104 = sphi 0, %s103
      %s118 = sphi 0, %s104
      %s122 = sphi 0, %s122
      %s124 = sphi 0, %s122
      %s125 = sphi 0, %s124
      %s139 = sphi 0, %s125
      %s143 = sphi 0, %s143
      %s145 = sphi 0, %s143
      %s146 = sphi 0, %s145
      %s160 = sphi 0, %s146
      %s166 = sphi 0, %s168
      %s169 = sphi 0, %s166
      %s170 = sphi 0, %s169
      %s186 = sphi 0, %s170
      %s192 = sphi 0, %s194
      %s195 = sphi 0, %s192
      %s196 = sphi 0, %s195
      %s212 = sphi 0, %s196
    $region4: #{_encoder_fwd.1} parent=1 // loop_header_branch
      %23 = sbr.rel (%p21) target = $region8
    $region5: #{_encoder_fwd.1} parent=1 // loop_body
      %s25 = ssub.s32 %s20, 1
      %s26 = ssub.s32 %s20, 2
      %s27 = sadd.s32 %s20, 1
      %s28 = ssub.s32 %s20, %s27
      %p29 = scmp.eq.s32.totalorder %s28, 0
      %s31 = sadd.s32 %s30, 1
      %s32 = scalar_select %p29, %s30, %s31
      %p35 = pneg %p29
      %p36 = scmp.eq.s32.totalorder %s20, 1
      %p37 = por %p35, %p36
      %p38 = scmp.ne.s32.totalorder %s30, %s33
      %p39 = scmp.eq.s32.totalorder %s20, 0
      %p40 = por %p38, %p39
      %p41 = scmp.ne.s32.totalorder %s30, %s33
      %p42 = scmp.eq.s32.totalorder %s25, 1
      %p43 = por %p41, %p42
      %p44 = scmp.ne.s32.totalorder %s33, %s34
      %p45 = scmp.eq.s32.totalorder %s25, 0
      %p46 = por %p44, %p45
      %p47 = scmp.ne.s32.totalorder %s33, %s34
      %p48 = scmp.eq.s32.totalorder %s26, 1
      %p49 = por %p47, %p48
      %p51 = scmp.ne.s32.totalorder %s34, %s50
      %p52 = scmp.eq.s32.totalorder %s26, 0
      %p53 = por %p51, %p52
      %s54 = ssub.s32 %s20, %s27
      %p55 = scmp.eq.s32.totalorder %s54, 0
      %s57 = sadd.s32 %s56, 1
      %s58 = scalar_select %p55, %s56, %s57
      %p61 = pneg %p55
      %p62 = scmp.eq.s32.totalorder %s20, 1
      %p63 = por %p61, %p62
      %p64 = scmp.ne.s32.totalorder %s56, %s59
      %p65 = scmp.eq.s32.totalorder %s20, 0
      %p66 = por %p64, %p65
      %p67 = scmp.ne.s32.totalorder %s56, %s59
      %p68 = scmp.eq.s32.totalorder %s25, 1
      %p69 = por %p67, %p68
      %p70 = scmp.ne.s32.totalorder %s59, %s60
      %p71 = scmp.eq.s32.totalorder %s25, 0
      %p72 = por %p70, %p71
      %p73 = scmp.ne.s32.totalorder %s59, %s60
      %p74 = scmp.eq.s32.totalorder %s26, 1
      %p75 = por %p73, %p74
      %p77 = scmp.ne.s32.totalorder %s60, %s76
      %p78 = scmp.eq.s32.totalorder %s26, 0
      %p79 = por %p77, %p78
      %s81 = sadd.s32 %s80, 1
      %p84 = scmp.eq.s32.totalorder %s20, 1
      %p85 = scmp.ne.s32.totalorder %s80, %s82
      %p86 = scmp.eq.s32.totalorder %s20, 0
      %p87 = por %p85, %p86
      %p88 = scmp.ne.s32.totalorder %s80, %s82
      %p89 = scmp.eq.s32.totalorder %s25, 1
      %p90 = por %p88, %p89
      %p91 = scmp.ne.s32.totalorder %s82, %s83
      %p92 = scmp.eq.s32.totalorder %s25, 0
      %p93 = por %p91, %p92
      %p94 = scmp.ne.s32.totalorder %s82, %s83
      %p95 = scmp.eq.s32.totalorder %s26, 1
      %p96 = por %p94, %p95
      %p98 = scmp.ne.s32.totalorder %s83, %s97
      %p99 = scmp.eq.s32.totalorder %s26, 0
      %p100 = por %p98, %p99
      %s102 = sadd.s32 %s101, 1
      %p105 = scmp.eq.s32.totalorder %s20, 1
      %p106 = scmp.ne.s32.totalorder %s101, %s103
      %p107 = scmp.eq.s32.totalorder %s20, 0
      %p108 = por %p106, %p107
      %p109 = scmp.ne.s32.totalorder %s101, %s103
      %p110 = scmp.eq.s32.totalorder %s25, 1
      %p111 = por %p109, %p110
      %p112 = scmp.ne.s32.totalorder %s103, %s104
      %p113 = scmp.eq.s32.totalorder %s25, 0
      %p114 = por %p112, %p113
      %p115 = scmp.ne.s32.totalorder %s103, %s104
      %p116 = scmp.eq.s32.totalorder %s26, 1
      %p117 = por %p115, %p116
      %p119 = scmp.ne.s32.totalorder %s104, %s118
      %p120 = scmp.eq.s32.totalorder %s26, 0
      %p121 = por %p119, %p120
      %s123 = sadd.s32 %s122, 1
      %p126 = scmp.eq.s32.totalorder %s20, 1
      %p127 = scmp.ne.s32.totalorder %s122, %s124
      %p128 = scmp.eq.s32.totalorder %s20, 0
      %p129 = por %p127, %p128
      %p130 = scmp.ne.s32.totalorder %s122, %s124
      %p131 = scmp.eq.s32.totalorder %s25, 1
      %p132 = por %p130, %p131
      %p133 = scmp.ne.s32.totalorder %s124, %s125
      %p134 = scmp.eq.s32.totalorder %s25, 0
      %p135 = por %p133, %p134
      %p136 = scmp.ne.s32.totalorder %s124, %s125
      %p137 = scmp.eq.s32.totalorder %s26, 1
      %p138 = por %p136, %p137
      %p140 = scmp.ne.s32.totalorder %s125, %s139
      %p141 = scmp.eq.s32.totalorder %s26, 0
      %p142 = por %p140, %p141
      %s144 = sadd.s32 %s143, 1
      %p147 = scmp.eq.s32.totalorder %s20, 1
      %p148 = scmp.ne.s32.totalorder %s143, %s145
      %p149 = scmp.eq.s32.totalorder %s20, 0
      %p150 = por %p148, %p149
      %p151 = scmp.ne.s32.totalorder %s143, %s145
      %p152 = scmp.eq.s32.totalorder %s25, 1
      %p153 = por %p151, %p152
      %p154 = scmp.ne.s32.totalorder %s145, %s146
      %p155 = scmp.eq.s32.totalorder %s25, 0
      %p156 = por %p154, %p155
      %p157 = scmp.ne.s32.totalorder %s145, %s146
      %p158 = scmp.eq.s32.totalorder %s26, 1
      %p159 = por %p157, %p158
      %p161 = scmp.ne.s32.totalorder %s146, %s160
      %p162 = scmp.eq.s32.totalorder %s26, 0
      %p163 = por %p161, %p162
      %s164 = ssub.s32 %s20, %s27
      %p165 = scmp.eq.s32.totalorder %s164, 0
      %s167 = sadd.s32 %s166, 1
      %s168 = scalar_select %p165, %s166, %s167
      %p171 = pneg %p165
      %p172 = scmp.eq.s32.totalorder %s20, 1
      %p173 = por %p171, %p172
      %p174 = scmp.ne.s32.totalorder %s166, %s169
      %p175 = scmp.eq.s32.totalorder %s20, 0
      %p176 = por %p174, %p175
      %p177 = scmp.ne.s32.totalorder %s166, %s169
      %p178 = scmp.eq.s32.totalorder %s25, 1
      %p179 = por %p177, %p178
      %p180 = scmp.ne.s32.totalorder %s169, %s170
      %p181 = scmp.eq.s32.totalorder %s25, 0
      %p182 = por %p180, %p181
      %p183 = scmp.ne.s32.totalorder %s169, %s170
      %p184 = scmp.eq.s32.totalorder %s26, 1
      %p185 = por %p183, %p184
      %p187 = scmp.ne.s32.totalorder %s170, %s186
      %p188 = scmp.eq.s32.totalorder %s26, 0
      %p189 = por %p187, %p188
      %s190 = ssub.s32 %s20, %s27
      %p191 = scmp.eq.s32.totalorder %s190, 0
      %s193 = sadd.s32 %s192, 1
      %s194 = scalar_select %p191, %s192, %s193
      %p197 = pneg %p191
      %p198 = scmp.eq.s32.totalorder %s20, 1
      %p199 = por %p197, %p198
      %p200 = scmp.ne.s32.totalorder %s192, %s195
      %p201 = scmp.eq.s32.totalorder %s20, 0
      %p202 = por %p200, %p201
      %p203 = scmp.ne.s32.totalorder %s192, %s195
      %p204 = scmp.eq.s32.totalorder %s25, 1
      %p205 = por %p203, %p204
      %p206 = scmp.ne.s32.totalorder %s195, %s196
      %p207 = scmp.eq.s32.totalorder %s25, 0
      %p208 = por %p206, %p207
      %p209 = scmp.ne.s32.totalorder %s195, %s196
      %p210 = scmp.eq.s32.totalorder %s26, 1
      %p211 = por %p209, %p210
      %p213 = scmp.ne.s32.totalorder %s196, %s212
      %p214 = scmp.eq.s32.totalorder %s26, 0
      %p215 = por %p213, %p214
      %p216 = scmp.le.s32.totalorder 1, %s20
      %p217 = scmp.lt.s32.totalorder %s20, 3
      %p218 = pnand %p216, %p217
      %p219 = pneg %p218
      // Predicated region
      $region9: #{_encoder_fwd.1} parent=5 // pred_check
        _
      $region10: #{_encoder_fwd.1} parent=5 // pred_check_branch
        %221 = sbr.rel (%p218) target = $region12
      $region11: #{_encoder_fwd.1} parent=5 // pred_region
        %s222 = ssub.s32 %s20, 1
        // Predicated region
        $region13: #{_encoder_fwd.1} parent=11 // pred_check
          %p223 = pneg %p93
        $region14: #{_encoder_fwd.1} parent=11 // pred_check_branch
          %225 = sbr.rel (%p223) target = $region16
        $region15: #{_encoder_fwd.1} parent=11 // pred_region
          _
        $region16: #{_encoder_fwd.1} parent=11 // pred_fallthru
          _
        // Predicated region
        $region17: #{_encoder_fwd.1} parent=11 // pred_check
          %p226 = pneg %p114
        $region18: #{_encoder_fwd.1} parent=11 // pred_check_branch
          %228 = sbr.rel (%p226) target = $region20
        $region19: #{_encoder_fwd.1} parent=11 // pred_region
          _
        $region20: #{_encoder_fwd.1} parent=11 // pred_fallthru
          _
        // Predicated region
        $region21: #{_encoder_fwd.1} parent=11 // pred_check
          %p229 = pneg %p135
        $region22: #{_encoder_fwd.1} parent=11 // pred_check_branch
          %231 = sbr.rel (%p229) target = $region24
        $region23: #{_encoder_fwd.1} parent=11 // pred_region
          _
        $region24: #{_encoder_fwd.1} parent=11 // pred_fallthru
          _
        // Predicated region
        $region25: #{_encoder_fwd.1} parent=11 // pred_check
          %p232 = pneg %p156
        $region26: #{_encoder_fwd.1} parent=11 // pred_check_branch
          %234 = sbr.rel (%p232) target = $region28
        $region27: #{_encoder_fwd.1} parent=11 // pred_region
          _
        $region28: #{_encoder_fwd.1} parent=11 // pred_fallthru
          _
      $region12: #{_encoder_fwd.1} parent=5 // pred_fallthru
        _
      %p235 = scmp.lt.s32.totalorder %s20, 2
      // Predicated region
      $region29: #{_encoder_fwd.1} parent=5 // pred_check
        %p236 = pneg %p235
      $region30: #{_encoder_fwd.1} parent=5 // pred_check_branch
        %238 = sbr.rel (%p236) target = $region32
      $region31: #{_encoder_fwd.1} parent=5 // pred_region
        // Predicated region
        $region33: #{_encoder_fwd.1} parent=31 // pred_check
          %p239 = pneg %p40
        $region34: #{_encoder_fwd.1} parent=31 // pred_check_branch
          %241 = sbr.rel (%p239) target = $region36
        $region35: #{_encoder_fwd.1} parent=31 // pred_region
          %p242 = scmp.lt.s32.totalorder %s20, 1
          %s243 = scalar_select %p242, %s20, 1
          %s244 = smul.addr %s243, 8
          %s245 = scalar_lea.vmem %s0, %s244
        $region36: #{_encoder_fwd.1} parent=31 // pred_fallthru
          _
        // Predicated region
        $region37: #{_encoder_fwd.1} parent=31 // pred_check
          %p246 = pneg %p66
        $region38: #{_encoder_fwd.1} parent=31 // pred_check_branch
          %248 = sbr.rel (%p246) target = $region40
        $region39: #{_encoder_fwd.1} parent=31 // pred_region
          %p249 = scmp.lt.s32.totalorder %s20, 1
          %s250 = scalar_select %p249, %s20, 1
          %s251 = smul.addr %s250, 8
          %s252 = scalar_lea.vmem %s1, %s251
        $region40: #{_encoder_fwd.1} parent=31 // pred_fallthru
          _
      $region32: #{_encoder_fwd.1} parent=5 // pred_fallthru
        _
      %p253 = scmp.le.s32.totalorder 1, %s20
      %p254 = scmp.lt.s32.totalorder %s20, 3
      %p255 = pnand %p253, %p254
      %p256 = pneg %p255
      // Predicated region
      $region41: #{_encoder_fwd.1} parent=5 // pred_check
        _
      $region42: #{_encoder_fwd.1} parent=5 // pred_check_branch
        %258 = sbr.rel (%p255) target = $region44
      $region43: #{_encoder_fwd.1} parent=5 // pred_region
        %s259 = ssub.s32 %s20, 1
        %p260 = scmp.lt.s32.totalorder %s25, 1
        %s261 = scalar_select %p260, %s25, 1
        %s262 = smul.addr %s261, 8
        %s263 = scalar_lea.vmem %s0, %s262
        %p264 = pneg %p46
        %p265 = pneg %p43
        %p266 = scmp.lt.s32.totalorder %s25, 1
        %s267 = scalar_select %p266, %s25, 1
        %s268 = smul.addr %s267, 8
        %s269 = scalar_lea.vmem %s1, %s268
        %p270 = pneg %p72
        %p271 = pneg %p69
        %p272 = pneg %p93
        %p273 = pneg %p90
        %p274 = pneg %p114
        %p275 = pneg %p111
        %p276 = pneg %p135
        %p277 = pneg %p132
        %p278 = pneg %p156
        %p279 = pneg %p153
        %p280 = pneg %p182
        %p281 = pneg %p179
        %s282 = sand.u32 %s169, 1
        %s283 = scalar_lea.sflag [#allocation3], %s282
        %s284 = sand.u32 %s169, 1
        %s285 = smul.addr %s284, 16
        %s286 = scalar_lea.vmem [#allocation2], %s285
        %p287 = pneg %p208
        %p288 = pneg %p205
        %s289 = sand.u32 %s195, 1
        %s290 = scalar_lea.sflag [#allocation5], %s289
        %s291 = sand.u32 %s195, 1
        %s292 = smul.addr %s291, 16
        %s293 = scalar_lea.vmem [#allocation4], %s292
        %p294 = scmp.lt.s32.totalorder %s25, 1
        %s295 = scalar_select %p294, %s25, 1
        %s296 = smul.addr %s295, 8
        %s297 = scalar_lea.vmem %s0, %s296
        %p298 = scmp.lt.s32.totalorder %s25, 1
        %s299 = scalar_select %p298, %s25, 1
        %s300 = smul.addr %s299, 8
        %s301 = scalar_lea.vmem %s1, %s300
        %v303 = vld [vmem:[%s297] sm:$0xff]
        %v304 = vpack.c.bf16 %v303, %v303
        %v305 = vld [vmem:[%s2] sm:$0xff]
        %v306 = vld [vmem:[%s2 + $0x8] sm:$0xff]
        %v307 = vld [vmem:[%s2 + $0x10] sm:$0xff]
        %v308 = vld [vmem:[%s2 + $0x18] sm:$0xff]
        %v309 = vld [vmem:[%s2 + $0x20] sm:$0xff]
        %v310 = vld [vmem:[%s2 + $0x28] sm:$0xff]
        %v311 = vld [vmem:[%s2 + $0x30] sm:$0xff]
        %v312 = vld [vmem:[%s2 + $0x38] sm:$0xff]
        %v313 = vld [vmem:[%s2 + $0x40] sm:$0xff]
        %v314 = vld [vmem:[%s2 + $0x48] sm:$0xff]
        %v315 = vld [vmem:[%s2 + $0x50] sm:$0xff]
        %v316 = vld [vmem:[%s2 + $0x58] sm:$0xff]
        %v317 = vld [vmem:[%s2 + $0x60] sm:$0xff]
        %v318 = vld [vmem:[%s2 + $0x68] sm:$0xff]
        %v319 = vld [vmem:[%s2 + $0x70] sm:$0xff]
        %v320 = vld [vmem:[%s2 + $0x78] sm:$0xff]
        %v321 = vld [vmem:[%s3] sm:$0x3]
        %v323 = vlaneseq
        %v324 = vshrl.u32 %v323, 7
        %v325 = vsub.s32 0, %v324
        %v326 = vrot.slane %v321, %v325
        %v327 = vlaneseq
        %v328 = vshrl.u32 %v327, 7
        %v329 = vsub.s32 1, %v328
        %v330 = vrot.slane %v321, %v329
        %v349 = vunpack.c.l.b16 %v305
        %v350 = vunpack.c.h.b16 %v305
        %v351 = vunpack.c.l.b16 %v306
        %v352 = vunpack.c.h.b16 %v306
        %v353 = vunpack.c.l.b16 %v307
        %v354 = vunpack.c.h.b16 %v307
        %v355 = vunpack.c.l.b16 %v308
        %v356 = vunpack.c.h.b16 %v308
        %v357 = vunpack.c.l.b16 %v309
        %v358 = vunpack.c.h.b16 %v309
        %v359 = vunpack.c.l.b16 %v310
        %v360 = vunpack.c.h.b16 %v310
        %v361 = vunpack.c.l.b16 %v311
        %v362 = vunpack.c.h.b16 %v311
        %v363 = vunpack.c.l.b16 %v312
        %v364 = vunpack.c.h.b16 %v312
        %v365 = vunpack.c.l.b16 %v313
        %v366 = vunpack.c.h.b16 %v313
        %v367 = vunpack.c.l.b16 %v314
        %v368 = vunpack.c.h.b16 %v314
        %v369 = vunpack.c.l.b16 %v315
        %v370 = vunpack.c.h.b16 %v315
        %v371 = vunpack.c.l.b16 %v316
        %v372 = vunpack.c.h.b16 %v316
        %v373 = vunpack.c.l.b16 %v317
        %v374 = vunpack.c.h.b16 %v317
        %v375 = vunpack.c.l.b16 %v318
        %v376 = vunpack.c.h.b16 %v318
        %v377 = vunpack.c.l.b16 %v319
        %v378 = vunpack.c.h.b16 %v319
        %v379 = vunpack.c.l.b16 %v320
        %v380 = vunpack.c.h.b16 %v320
        %v381 = vpack.c.b16 %v351, %v349
        %v382 = vpack.c.b16 %v352, %v350
        %v383 = vpack.c.b16 %v355, %v353
        %v384 = vpack.c.b16 %v356, %v354
        %v385 = vpack.c.b16 %v359, %v357
        %v386 = vpack.c.b16 %v360, %v358
        %v387 = vpack.c.b16 %v363, %v361
        %v388 = vpack.c.b16 %v364, %v362
        %v389 = vpack.c.b16 %v367, %v365
        %v390 = vpack.c.b16 %v368, %v366
        %v391 = vpack.c.b16 %v371, %v369
        %v392 = vpack.c.b16 %v372, %v370
        %v393 = vpack.c.b16 %v375, %v373
        %v394 = vpack.c.b16 %v376, %v374
        %v395 = vpack.c.b16 %v379, %v377
        %v396 = vpack.c.b16 %v380, %v378
        %413 = vmatprep.subr.bf16.mxu0 %v382
        %414 = vmatpush1.bf16.msra.mxu0 %v381
        %415 = vmatprep.subr.bf16.mxu0 %v384
        %416 = vmatpush1.bf16.msra.mxu0 %v383
        %417 = vmatprep.subr.bf16.mxu0 %v386
        %418 = vmatpush1.bf16.msra.mxu0 %v385
        %419 = vmatprep.subr.bf16.mxu0 %v388
        %420 = vmatpush1.bf16.msra.mxu0 %v387
        %421 = vmatprep.subr.bf16.mxu0 %v390
        %422 = vmatpush1.bf16.msra.mxu0 %v389
        %423 = vmatprep.subr.bf16.mxu0 %v392
        %424 = vmatpush1.bf16.msra.mxu0 %v391
        %425 = vmatprep.subr.bf16.mxu0 %v394
        %426 = vmatpush1.bf16.msra.mxu0 %v393
        %427 = vmatprep.subr.bf16.mxu0 %v396
        %428 = vmatpush1.bf16.msra.mxu0 %v395
        %429 = vmatprep.subr.bf16.mxu0 0
        %430 = vmatpush1.bf16.msra.mxu0 0
        %431 = vmatprep.subr.bf16.mxu0 0
        %432 = vmatpush1.bf16.msra.mxu0 0
        %433 = vmatprep.subr.bf16.mxu0 0
        %434 = vmatpush1.bf16.msra.mxu0 0
        %435 = vmatprep.subr.bf16.mxu0 0
        %436 = vmatpush1.bf16.msra.mxu0 0
        %437 = vmatprep.subr.bf16.mxu0 0
        %438 = vmatpush1.bf16.msra.mxu0 0
        %439 = vmatprep.subr.bf16.mxu0 0
        %440 = vmatpush1.bf16.msra.mxu0 0
        %441 = vmatprep.subr.bf16.mxu0 0
        %442 = vmatpush1.bf16.msra.mxu0 0
        %443 = vmatprep.subr.bf16.mxu0 0
        %444 = vmatpush1.bf16.msra.mxu0 0
        %445 = vmatprep.mubr.bf16.mxu0 0
        %446 = vmatmul.mubr.bf16.gmra.mrb[0].mxu0 %v304
        %v447 = vpop.f32.mrb[0].mxu0
        %v448 = vadd.f32 %v326, %v447
        %v449 = vpop.f32.mrb[0].mxu0
        %v450 = vadd.f32 %v330, %v449
        %v451 = vpop.f32.mrb[0].mxu0
        %v452 = vpop.f32.mrb[0].mxu0
        %453 = vdwg.mxu0
        %v454 = vmul.f32 %v448, %v448
        %v455 = vmul.f32 %v450, %v450
        %v456 = vadd.f32 %v454, %v455
        %457 = vadd.xlane.f32.xlu0 %v456
        %v458 = vpop.xlane.xlu0 %457
        %v459 = vrsqrt.pop %v458
        %v460 = vmul.f32 %v458, %v459
        %vm461 = vcmp.eq.f32.partialorder %v458, inf
        %v462 = vsel %vm461, %v458, %v460
        %vm463 = vcmp.eq.f32.partialorder %v458, 0.0
        %v464 = vand.u32 %v458, 2147483648
        %v465 = vsel %vm463, %v464, %v462
        %v466 = vadd.f32 %v465, 1e-08
        %v467 = vrcp.pop %v466
        %v468 = vmul.f32 %v448, %v467
        %v469 = vmul.f32 %v450, %v467
        %470 = vst [vmem:[%s286] sm:$0xff] %v468
        %471 = vst [vmem:[%s286 + $0x8] sm:$0xff] %v469
        %v472 = vld [vmem:[%s301] sm:$0xff]
        %v473 = vld [vmem:[%s4] sm:$0xff]
        %v474 = vld [vmem:[%s4 + $0x8] sm:$0xff]
        %v475 = vld [vmem:[%s5] sm:$0x3]
        %v477 = vlaneseq
        %v478 = vshrl.u32 %v477, 7
        %v479 = vsub.s32 0, %v478
        %v480 = vrot.slane %v475, %v479
        %v481 = vlaneseq
        %v482 = vshrl.u32 %v481, 7
        %v483 = vsub.s32 1, %v482
        %v484 = vrot.slane %v475, %v483
        %vm487 = vcmask 64512
        %v489 = vsel %vm487, %v472, 0
        %491 = vmatprep.subr.mxu0 %v474
        %492 = vmatpush1.msra.mxu0 %v473
        %493 = vmatprep.subr.mxu0 0.0
        %494 = vmatpush1.msra.mxu0 0.0
        %495 = vmatprep.subr.mxu0 0.0
        %496 = vmatpush1.msra.mxu0 0.0
        %497 = vmatprep.subr.mxu0 0.0
        %498 = vmatpush1.msra.mxu0 0.0
        %499 = vmatprep.subr.mxu0 0.0
        %500 = vmatpush1.msra.mxu0 0.0
        %501 = vmatprep.subr.mxu0 0.0
        %502 = vmatpush1.msra.mxu0 0.0
        %503 = vmatprep.subr.mxu0 0.0
        %504 = vmatpush1.msra.mxu0 0.0
        %505 = vmatprep.subr.mxu0 0.0
        %506 = vmatpush1.msra.mxu0 0.0
        %507 = vmatprep.subr.mxu0 0.0
        %508 = vmatpush1.msra.mxu0 0.0
        %509 = vmatprep.subr.mxu0 0.0
        %510 = vmatpush1.msra.mxu0 0.0
        %511 = vmatprep.subr.mxu0 0.0
        %512 = vmatpush1.msra.mxu0 0.0
        %513 = vmatprep.subr.mxu0 0.0
        %514 = vmatpush1.msra.mxu0 0.0
        %515 = vmatprep.subr.mxu0 0.0
        %516 = vmatpush1.msra.mxu0 0.0
        %517 = vmatprep.subr.mxu0 0.0
        %518 = vmatpush1.msra.mxu0 0.0
        %519 = vmatprep.subr.mxu0 0.0
        %520 = vmatpush1.msra.mxu0 0.0
        %521 = vmatprep.subr.mxu0 0.0
        %522 = vmatpush1.msra.mxu0 0.0
        %523 = vmatprep.subr.mxu0 0.0
        %524 = vmatpush1.msra.mxu0 0.0
        %525 = vmatprep.subr.mxu0 0.0
        %526 = vmatpush1.msra.mxu0 0.0
        %527 = vmatprep.subr.mxu0 0.0
        %528 = vmatpush1.msra.mxu0 0.0
        %529 = vmatprep.subr.mxu0 0.0
        %530 = vmatpush1.msra.mxu0 0.0
        %531 = vmatprep.subr.mxu0 0.0
        %532 = vmatpush1.msra.mxu0 0.0
        %533 = vmatprep.subr.mxu0 0.0
        %534 = vmatpush1.msra.mxu0 0.0
        %535 = vmatprep.subr.mxu0 0.0
        %536 = vmatpush1.msra.mxu0 0.0
        %537 = vmatprep.subr.mxu0 0.0
        %538 = vmatpush1.msra.mxu0 0.0
        %539 = vmatprep.subr.mxu0 0.0
        %540 = vmatpush1.msra.mxu0 0.0
        %541 = vmatprep.subr.mxu0 0.0
        %542 = vmatpush1.msra.mxu0 0.0
        %543 = vmatprep.subr.mxu0 0.0
        %544 = vmatpush1.msra.mxu0 0.0
        %545 = vmatprep.subr.mxu0 0.0
        %546 = vmatpush1.msra.mxu0 0.0
        %547 = vmatprep.subr.mxu0 0.0
        %548 = vmatpush1.msra.mxu0 0.0
        %549 = vmatprep.subr.mxu0 0.0
        %550 = vmatpush1.msra.mxu0 0.0
        %551 = vmatprep.subr.mxu0 0.0
        %552 = vmatpush1.msra.mxu0 0.0
        %553 = vmatprep.subr.mxu0 0.0
        %554 = vmatpush1.msra.mxu0 0.0
        %555 = vmatprep.mubr.f32.mxu0 0.0
        %556 = vmatmul.mubr.f32.gmra.mrb[0].mxu0 %v489
        %v557 = vpop.f32.mrb[0].mxu0
        %v558 = vadd.f32 %v480, %v557
        %v559 = vpop.f32.mrb[0].mxu0
        %v560 = vadd.f32 %v484, %v559
        %561 = vdwg.mxu0
        %v562 = vsub.f32 0.0, %v558
        %v563 = vsub.f32 0.0, %v560
        %v564 = vmul.f32 %v562, 1.442695
        %v565 = vpow.pop %v564
        %v566 = vmul.f32 %v563, 1.442695
        %v567 = vpow.pop %v566
        %v568 = vadd.f32 %v565, 1.0
        %v569 = vadd.f32 %v567, 1.0
        %v570 = vrcp.pop %v568
        %v571 = vrcp.pop %v569
        %572 = vst [vmem:[%s293] sm:$0xff] %v570
        %573 = vst [vmem:[%s293 + $0x8] sm:$0xff] %v571
        %s574 = sand.u32 %s169, 1
        %s575 = scalar_lea.sflag [#allocation3], %s574
        %s576 = sand.u32 %s169, 1
        %s577 = smul.addr %s576, 16
        %s578 = scalar_lea.vmem [#allocation2], %s577
        %s579 = sand.u32 %s195, 1
        %s580 = scalar_lea.sflag [#allocation5], %s579
        %s581 = sand.u32 %s195, 1
        %s582 = smul.addr %s581, 16
        %s583 = scalar_lea.vmem [#allocation4], %s582
        // Predicated region
        $region45: #{_encoder_fwd.1} parent=43 // pred_check
          %p584 = pneg %p179
        $region46: #{_encoder_fwd.1} parent=43 // pred_check_branch
          %586 = sbr.rel (%p584) target = $region48
        $region47: #{_encoder_fwd.1} parent=43 // pred_region
          %s588 = ssub.s32 256, 256
          %589 = vsyncadd %s575, %s588
          %s590 = smul.addr %s25, 2
          %s591 = smul.addr %s590, 128
          %s592 = scalar_lea.hbm %s6, %s591
          %s594 = sshll.u32 %s578, 4
          %s595 = int_to_ptr.vmem [resolvable:$true] %s594
          %597 = dma.vmem_to_hbm [thread:$0]  %s595, 256, %s592, %s575
        $region48: #{_encoder_fwd.1} parent=43 // pred_fallthru
          _
        // Predicated region
        $region49: #{_encoder_fwd.1} parent=43 // pred_check
          %p598 = pneg %p205
        $region50: #{_encoder_fwd.1} parent=43 // pred_check_branch
          %600 = sbr.rel (%p598) target = $region52
        $region51: #{_encoder_fwd.1} parent=43 // pred_region
          %s602 = ssub.s32 256, 256
          %603 = vsyncadd %s580, %s602
          %s604 = smul.addr %s25, 2
          %s605 = smul.addr %s604, 128
          %s606 = scalar_lea.hbm %s7, %s605
          %s608 = sshll.u32 %s583, 4
          %s609 = int_to_ptr.vmem [resolvable:$true] %s608
          %611 = dma.vmem_to_hbm [thread:$0]  %s609, 256, %s606, %s580
        $region52: #{_encoder_fwd.1} parent=43 // pred_fallthru
          _
      $region44: #{_encoder_fwd.1} parent=5 // pred_fallthru
        _
      %p612 = scmp.le.s32.totalorder 2, %s20
      // Predicated region
      $region53: #{_encoder_fwd.1} parent=5 // pred_check
        %p613 = pneg %p612
      $region54: #{_encoder_fwd.1} parent=5 // pred_check_branch
        %615 = sbr.rel (%p613) target = $region56
      $region55: #{_encoder_fwd.1} parent=5 // pred_region
        %s616 = ssub.s32 %s20, 2
        // Predicated region
        $region57: #{_encoder_fwd.1} parent=55 // pred_check
          %p617 = pneg %p185
        $region58: #{_encoder_fwd.1} parent=55 // pred_check_branch
          %619 = sbr.rel (%p617) target = $region60
        $region59: #{_encoder_fwd.1} parent=55 // pred_region
          %s620 = sand.u32 %s170, 1
          %s621 = scalar_lea.sflag [#allocation3], %s620
          %s622 = sand.u32 %s170, 1
          %s623 = smul.addr %s622, 16
          %s624 = scalar_lea.vmem [#allocation2], %s623
          %625 = dma.done %s621, 256
        $region60: #{_encoder_fwd.1} parent=55 // pred_fallthru
          _
        // Predicated region
        $region61: #{_encoder_fwd.1} parent=55 // pred_check
          %p626 = pneg %p211
        $region62: #{_encoder_fwd.1} parent=55 // pred_check_branch
          %628 = sbr.rel (%p626) target = $region64
        $region63: #{_encoder_fwd.1} parent=55 // pred_region
          %s629 = sand.u32 %s196, 1
          %s630 = scalar_lea.sflag [#allocation5], %s629
          %s631 = sand.u32 %s196, 1
          %s632 = smul.addr %s631, 16
          %s633 = scalar_lea.vmem [#allocation4], %s632
          %634 = dma.done %s630, 256
        $region64: #{_encoder_fwd.1} parent=55 // pred_fallthru
          _
      $region56: #{_encoder_fwd.1} parent=5 // pred_fallthru
        _
    $region6: #{_encoder_fwd.1} parent=1 // loop_footer
      %s24 = sadd.s32 1, %s20
    $region7: #{_encoder_fwd.1} parent=1 // loop_footer_branch
      %19 = sbr.rel target = $region3
    $region8: #{_encoder_fwd.1} parent=1 // loop_exit
      _
    %635 = vsyncpa [#allocation3], 1
    %s636 = scalar_lea.sflag [#allocation3], 1
    %637 = vsyncpa %s636, 1
    %638 = vsyncpa [#allocation5], 1
    %s639 = scalar_lea.sflag [#allocation5], 1
    %640 = vsyncpa %s639, 1

</llo_original>
